<compile_context>
chip_gen: v7x
topology: tpu7x:2x2x1
jax: 0.10.0
libtpu: 0.0.40
codegen_flags: <defaults>
</compile_context>

<pallas_src>
import jax
import jax.numpy as jnp
from jax import lax
from jax.experimental import pallas as pl
from jax.experimental.pallas import tpu as pltpu

# -------- scaled-down but shape-consistent PCCoder configuration --------
BATCH = 256                 # total rows
IN_FEATURES = 32            # flattened program-state embedding fed to encoder
DENSE_OUTPUT_SIZE = 64      # params.dense_output_size
NUM_STATEMENTS = 128        # num_statements
MAX_PROGRAM_VARS = 11       # params.max_program_vars
NUM_OPERATORS = 38          # num_operators

HEAD_PAD = 128              # statement block width (one full 128-lane block)
DROP_OFF = 128              # drop head lanes [128, 139)
OP_OFF = 192                # operator head lanes [192, 230) (8-lane aligned)
FUSED_WIDTH = 256           # stmt block | (drop + operator) shared block


def pccoder_kernel(x_ref, w1_ref, b1_ref, w2_ref, b2_ref, wh_ref, bh_ref,
                   out_ref):
    """Fused encoder MLP + fused (statement | drop+operator) head matmul."""
    # --- DenseEncoder (synthetic 2-layer MLP, ReLU), bf16 matmuls, f32 acc ---
    x = x_ref[...].astype(jnp.bfloat16)
    h = jnp.dot(x, w1_ref[...], preferred_element_type=jnp.float32) + b1_ref[...]
    h = jnp.maximum(h, 0.0).astype(jnp.bfloat16)
    h = jnp.dot(h, w2_ref[...], preferred_element_type=jnp.float32) + b2_ref[...]
    h = jnp.maximum(h, 0.0).astype(jnp.bfloat16)

    # --- single fused head matmul: (tile_b, 64) @ (64, 256), f32 acc ---
    z = jnp.dot(h, wh_ref[...], preferred_element_type=jnp.float32) + bh_ref[...]

    # Retire the statement block immediately (128-lane aligned, unmasked vst),
    # before the EUP sigmoid work on the second block.
    out_ref[:, :HEAD_PAD] = z[:, :HEAD_PAD]

    # Second 128-lane block: sigmoid only on the drop lanes [0:11); operator
    # logits (lanes [64:102) of this block) and zero-padded lanes pass through.
    z2 = z[:, HEAD_PAD:]
    lane = lax.broadcasted_iota(jnp.int32, z2.shape, 1)
    out_ref[:, HEAD_PAD:] = jnp.where(lane < MAX_PROGRAM_VARS,
                                      jax.nn.sigmoid(z2), z2)


def _num_grid_steps(batch):
    """1 step on single-TC chips (v5e/v6e); 2 CORE_PARALLEL steps on v7x."""
    try:
        kind = jax.devices()[0].device_kind.lower()
        two_cores = ("v7" in kind) or ("7x" in kind)
    except Exception:  # pragma: no cover - defensive
        two_cores = False
    if two_cores and batch % 16 == 0:
        return 2, (pltpu.CORE_PARALLEL,)
    return 1, (pltpu.ARBITRARY,)


def pccoder_forward(x, kp):
    """Fused PCCoder forward.

    x: (B, IN_FEATURES) f32.  Returns (statement, drop, operator) exactly like
    PCCoder.forward(x, get_operator_head=True).
    """
    B = x.shape[0]
    steps, dim_sem = _num_grid_steps(B)
    tile_b = B // steps
    grid = (steps,)

    # Constant index_maps keep weights/biases VMEM-resident across grid steps.
    const = lambda i: (0, 0)
    in_specs = [
        pl.BlockSpec((tile_b, IN_FEATURES), lambda i: (i, 0)),        # x
        pl.BlockSpec((IN_FEATURES, DENSE_OUTPUT_SIZE), const),        # w1
        pl.BlockSpec((1, DENSE_OUTPUT_SIZE), const),                  # b1
        pl.BlockSpec((DENSE_OUTPUT_SIZE, DENSE_OUTPUT_SIZE), const),  # w2
        pl.BlockSpec((1, DENSE_OUTPUT_SIZE), const),                  # b2
        pl.BlockSpec((DENSE_OUTPUT_SIZE, FUSED_WIDTH), const),        # fused W
        pl.BlockSpec((1, FUSED_WIDTH), const),                        # fused b
    ]
    out_spec = pl.BlockSpec((tile_b, FUSED_WIDTH), lambda i: (i, 0))

    flops = 2 * B * (IN_FEATURES * DENSE_OUTPUT_SIZE
                     + DENSE_OUTPUT_SIZE * DENSE_OUTPUT_SIZE
                     + DENSE_OUTPUT_SIZE * FUSED_WIDTH)
    weight_bytes = sum(int(kp[k].size) * kp[k].dtype.itemsize
                       for k in ("w1", "b1", "w2", "b2", "wh", "bh"))
    bytes_accessed = int(x.size) * 4 + weight_bytes + B * FUSED_WIDTH * 4

    fused = pl.pallas_call(
        pccoder_kernel,
        out_shape=jax.ShapeDtypeStruct((B, FUSED_WIDTH), jnp.float32),
        grid=grid,
        in_specs=in_specs,
        out_specs=out_spec,
        compiler_params=pltpu.CompilerParams(dimension_semantics=dim_sem),
        cost_estimate=pl.CostEstimate(
            flops=flops,
            transcendentals=B * HEAD_PAD,       # sigmoid on the second block
            bytes_accessed=bytes_accessed),
    )(x, kp["w1"], kp["b1"], kp["w2"], kp["b2"], kp["wh"], kp["bh"])

    statement = fused[:, :NUM_STATEMENTS]
    drop = fused[:, DROP_OFF:DROP_OFF + MAX_PROGRAM_VARS]
    operator = fused[:, OP_OFF:OP_OFF + NUM_OPERATORS]
    return statement, drop, operator


def init_params(key):
    """Deterministic synthetic init (uniform, fan-in scaled, like nn.Linear).

    Returns (kernel_params, ref_params):
      kernel_params: bf16 weights, f32 biases, heads fused+packed to 256 lanes.
      ref_params:    plain f32 per-head weights for the pure-JAX reference.
    """
    def linear(k, fan_in, fan_out):
        kw, kb = jax.random.split(k)
        bound = 1.0 / jnp.sqrt(fan_in)
        w = jax.random.uniform(kw, (fan_in, fan_out), jnp.float32, -bound, bound)
        b = jax.random.uniform(kb, (1, fan_out), jnp.float32, -bound, bound)
        return w, b

    k1, k2, k3, k4, k5 = jax.random.split(key, 5)
    w1, b1 = linear(k1, IN_FEATURES, DENSE_OUTPUT_SIZE)
    w2, b2 = linear(k2, DENSE_OUTPUT_SIZE, DENSE_OUTPUT_SIZE)
    ws, bs = linear(k3, DENSE_OUTPUT_SIZE, NUM_STATEMENTS)
    wd, bd = linear(k4, DENSE_OUTPUT_SIZE, MAX_PROGRAM_VARS)
    wo, bo = linear(k5, DENSE_OUTPUT_SIZE, NUM_OPERATORS)

    # Fuse + zero-pad the three heads into one lane-dense (64, 256) slab:
    # stmt @ [0:128), drop @ [128:139), operator @ [192:230).
    wh = jnp.zeros((DENSE_OUTPUT_SIZE, FUSED_WIDTH), jnp.float32)
    wh = wh.at[:, :NUM_STATEMENTS].set(ws)
    wh = wh.at[:, DROP_OFF:DROP_OFF + MAX_PROGRAM_VARS].set(wd)
    wh = wh.at[:, OP_OFF:OP_OFF + NUM_OPERATORS].set(wo)
    bh = jnp.zeros((1, FUSED_WIDTH), jnp.float32)
    bh = bh.at[:, :NUM_STATEMENTS].set(bs)
    bh = bh.at[:, DROP_OFF:DROP_OFF + MAX_PROGRAM_VARS].set(bd)
    bh = bh.at[:, OP_OFF:OP_OFF + NUM_OPERATORS].set(bo)

    kernel_params = dict(
        w1=w1.astype(jnp.bfloat16), b1=b1,
        w2=w2.astype(jnp.bfloat16), b2=b2,
        wh=wh.astype(jnp.bfloat16), bh=bh,
    )
    ref_params = dict(w1=w1, b1=b1, w2=w2, b2=b2,
                      ws=ws, bs=bs, wd=wd, bd=bd, wo=wo, bo=bo)
    return kernel_params, ref_params


def pccoder_reference(x, p):
    """Pure-JAX reference mirroring the kernel numerics (bf16 matmul, f32 acc)."""
    bf = lambda a: a.astype(jnp.bfloat16)
    h = jnp.maximum(
        jnp.dot(bf(x), bf(p["w1"]), preferred_element_type=jnp.float32) + p["b1"],
        0.0)
    h = jnp.maximum(
        jnp.dot(bf(h), bf(p["w2"]), preferred_element_type=jnp.float32) + p["b2"],
        0.0)
    stmt = jnp.dot(bf(h), bf(p["ws"]), preferred_element_type=jnp.float32) + p["bs"]
    drop = jax.nn.sigmoid(
        jnp.dot(bf(h), bf(p["wd"]), preferred_element_type=jnp.float32) + p["bd"])
    op = jnp.dot(bf(h), bf(p["wo"]), preferred_element_type=jnp.float32) + p["bo"]
    return stmt, drop, op


if __name__ == "__main__":
    key = jax.random.PRNGKey(0)
    kx, kp = jax.random.split(key)

    x = jax.random.normal(kx, (BATCH, IN_FEATURES), jnp.float32)
    kernel_params, ref_params = init_params(kp)

    stmt, drop, op = pccoder_forward(x, kernel_params)
    jax.block_until_ready((stmt, drop, op))

    # correctness check against pure-JAX reference (same bf16/f32 numerics)
    stmt_r, drop_r, op_r = pccoder_reference(x, ref_params)
    assert stmt.shape == (BATCH, NUM_STATEMENTS)
    assert drop.shape == (BATCH, MAX_PROGRAM_VARS)
    assert op.shape == (BATCH, NUM_OPERATORS)
    assert jnp.allclose(stmt, stmt_r, atol=2e-3, rtol=2e-3)
    assert jnp.allclose(drop, drop_r, atol=2e-3, rtol=2e-3)
    assert jnp.allclose(op, op_r, atol=2e-3, rtol=2e-3)

    print("KERNEL_OK")
</pallas_src>

<mosaic_0001>
module attributes {stable_mosaic.version = 11 : i64} {
  func.func @pccoder_kernel(%arg0: i32, %arg1: memref<256x32xf32, #tpu.memory_space<vmem>>, %arg2: memref<32x64xbf16, #tpu.memory_space<vmem>>, %arg3: memref<1x64xf32, #tpu.memory_space<vmem>>, %arg4: memref<64x64xbf16, #tpu.memory_space<vmem>>, %arg5: memref<1x64xf32, #tpu.memory_space<vmem>>, %arg6: memref<64x256xbf16, #tpu.memory_space<vmem>>, %arg7: memref<1x256xf32, #tpu.memory_space<vmem>>, %arg8: memref<256x256xf32, #tpu.memory_space<vmem>>) attributes {dimension_semantics = [#tpu.dimension_semantics<arbitrary>], iteration_bounds = array<i64: 1>, scalar_prefetch = 0 : i64, scratch_operands = 0 : i64, tpu.core_type = #tpu.core_type<tc>, window_params = [{transform_indices = @transform_0, window_bounds = array<i64: 256, 32>}, {pipeline_mode = #tpu.pipeline_mode<synchronous>, transform_indices = @transform_1, window_bounds = array<i64: 32, 64>}, {pipeline_mode = #tpu.pipeline_mode<synchronous>, transform_indices = @transform_2, window_bounds = array<i64: 1, 64>}, {pipeline_mode = #tpu.pipeline_mode<synchronous>, transform_indices = @transform_3, window_bounds = array<i64: 64, 64>}, {pipeline_mode = #tpu.pipeline_mode<synchronous>, transform_indices = @transform_4, window_bounds = array<i64: 1, 64>}, {pipeline_mode = #tpu.pipeline_mode<synchronous>, transform_indices = @transform_5, window_bounds = array<i64: 64, 256>}, {pipeline_mode = #tpu.pipeline_mode<synchronous>, transform_indices = @transform_6, window_bounds = array<i64: 1, 256>}, {transform_indices = @transform_7, window_bounds = array<i64: 256, 256>}]} {
    %c0 = arith.constant 0 : index
    %c0_0 = arith.constant 0 : index
    %0 = vector.load %arg1[%c0, %c0_0] : memref<256x32xf32, #tpu.memory_space<vmem>>, vector<256x32xf32>
    %1 = arith.truncf %0 : vector<256x32xf32> to vector<256x32xbf16>
    %c0_1 = arith.constant 0 : index
    %c0_2 = arith.constant 0 : index
    %2 = vector.load %arg2[%c0_1, %c0_2] : memref<32x64xbf16, #tpu.memory_space<vmem>>, vector<32x64xbf16>
    %cst = arith.constant dense<0.000000e+00> : vector<256x64xf32>
    %3 = tpu.matmul %1, %2, %cst {dimension_numbers = #tpu.dot_dimension_numbers<[1], [0], [0], [1], [0, 0, 1, 1], [], []>} : vector<256x32xbf16>, vector<32x64xbf16>, vector<256x64xf32> -> vector<256x64xf32>
    %c0_3 = arith.constant 0 : index
    %c0_4 = arith.constant 0 : index
    %4 = vector.load %arg3[%c0_3, %c0_4] : memref<1x64xf32, #tpu.memory_space<vmem>>, vector<1x64xf32>
    %5 = vector.broadcast %4 : vector<1x64xf32> to vector<256x64xf32>
    %6 = arith.addf %3, %5 : vector<256x64xf32>
    %cst_5 = arith.constant 0.000000e+00 : f32
    %7 = vector.broadcast %cst_5 : f32 to vector<256x64xf32>
    %8 = arith.maximumf %6, %7 : vector<256x64xf32>
    %9 = arith.truncf %8 : vector<256x64xf32> to vector<256x64xbf16>
    %c0_6 = arith.constant 0 : index
    %c0_7 = arith.constant 0 : index
    %10 = vector.load %arg4[%c0_6, %c0_7] : memref<64x64xbf16, #tpu.memory_space<vmem>>, vector<64x64xbf16>
    %cst_8 = arith.constant dense<0.000000e+00> : vector<256x64xf32>
    %11 = tpu.matmul %9, %10, %cst_8 {dimension_numbers = #tpu.dot_dimension_numbers<[1], [0], [0], [1], [0, 0, 1, 1], [], []>} : vector<256x64xbf16>, vector<64x64xbf16>, vector<256x64xf32> -> vector<256x64xf32>
    %c0_9 = arith.constant 0 : index
    %c0_10 = arith.constant 0 : index
    %12 = vector.load %arg5[%c0_9, %c0_10] : memref<1x64xf32, #tpu.memory_space<vmem>>, vector<1x64xf32>
    %13 = vector.broadcast %12 : vector<1x64xf32> to vector<256x64xf32>
    %14 = arith.addf %11, %13 : vector<256x64xf32>
    %cst_11 = arith.constant 0.000000e+00 : f32
    %15 = vector.broadcast %cst_11 : f32 to vector<256x64xf32>
    %16 = arith.maximumf %14, %15 : vector<256x64xf32>
    %17 = arith.truncf %16 : vector<256x64xf32> to vector<256x64xbf16>
    %c0_12 = arith.constant 0 : index
    %c0_13 = arith.constant 0 : index
    %18 = vector.load %arg6[%c0_12, %c0_13] : memref<64x256xbf16, #tpu.memory_space<vmem>>, vector<64x256xbf16>
    %cst_14 = arith.constant dense<0.000000e+00> : vector<256x256xf32>
    %19 = tpu.matmul %17, %18, %cst_14 {dimension_numbers = #tpu.dot_dimension_numbers<[1], [0], [0], [1], [0, 0, 1, 1], [], []>} : vector<256x64xbf16>, vector<64x256xbf16>, vector<256x256xf32> -> vector<256x256xf32>
    %c0_15 = arith.constant 0 : index
    %c0_16 = arith.constant 0 : index
    %20 = vector.load %arg7[%c0_15, %c0_16] : memref<1x256xf32, #tpu.memory_space<vmem>>, vector<1x256xf32>
    %21 = vector.broadcast %20 : vector<1x256xf32> to vector<256x256xf32>
    %22 = arith.addf %19, %21 : vector<256x256xf32>
    %23 = vector.extract_strided_slice %22 {offsets = [0, 0], sizes = [256, 128], strides = [1, 1]} : vector<256x256xf32> to vector<256x128xf32>
    %c0_17 = arith.constant 0 : index
    %c0_18 = arith.constant 0 : index
    %24 = vector.load %arg8[%c0_17, %c0_18] : memref<256x256xf32, #tpu.memory_space<vmem>>, vector<256x128xf32>
    tpu.vector_store %arg8[%c0_17, %c0_18], %23 {strides = array<i32>} : memref<256x256xf32, #tpu.memory_space<vmem>>, vector<256x128xf32>,
    %25 = vector.extract_strided_slice %22 {offsets = [0, 128], sizes = [256, 128], strides = [1, 1]} : vector<256x256xf32> to vector<256x128xf32>
    %26 = tpu.iota {dimensions = array<i32: 1>} : vector<256x128xi32>
    %c11_i32 = arith.constant 11 : i32
    %27 = vector.broadcast %c11_i32 : i32 to vector<256x128xi32>
    %28 = arith.cmpi slt, %26, %27 : vector<256x128xi32>
    %29 = arith.negf %25 : vector<256x128xf32>
    %30 = math.exp %29 : vector<256x128xf32>
    %cst_19 = arith.constant 1.000000e+00 : f32
    %31 = vector.broadcast %cst_19 : f32 to vector<256x128xf32>
    %32 = arith.addf %31, %30 : vector<256x128xf32>
    %33 = arith.divf %31, %32 : vector<256x128xf32>
    %34 = arith.select %28, %33, %25 : vector<256x128xi1>, vector<256x128xf32>
    %c0_20 = arith.constant 0 : index
    %c128 = arith.constant 128 : index
    %35 = vector.load %arg8[%c0_20, %c128] : memref<256x256xf32, #tpu.memory_space<vmem>>, vector<256x128xf32>
    tpu.vector_store %arg8[%c0_20, %c128], %34 {strides = array<i32>} : memref<256x256xf32, #tpu.memory_space<vmem>>, vector<256x128xf32>,
    return
  }
  func.func @transform_0(%arg0: i32) -> (i32, i32) {
    %c0_i32 = arith.constant 0 : i32
    %c0_i32_0 = arith.constant 0 : i32
    return %arg0, %c0_i32 : i32, i32
  }
  func.func @transform_1(%arg0: i32) -> (i32, i32) {
    %c0_i32 = arith.constant 0 : i32
    %c0_i32_0 = arith.constant 0 : i32
    %c0_i32_1 = arith.constant 0 : i32
    return %c0_i32, %c0_i32_0 : i32, i32
  }
  func.func @transform_2(%arg0: i32) -> (i32, i32) {
    %c0_i32 = arith.constant 0 : i32
    %c0_i32_0 = arith.constant 0 : i32
    %c0_i32_1 = arith.constant 0 : i32
    return %c0_i32, %c0_i32_0 : i32, i32
  }
  func.func @transform_3(%arg0: i32) -> (i32, i32) {
    %c0_i32 = arith.constant 0 : i32
    %c0_i32_0 = arith.constant 0 : i32
    %c0_i32_1 = arith.constant 0 : i32
    return %c0_i32, %c0_i32_0 : i32, i32
  }
  func.func @transform_4(%arg0: i32) -> (i32, i32) {
    %c0_i32 = arith.constant 0 : i32
    %c0_i32_0 = arith.constant 0 : i32
    %c0_i32_1 = arith.constant 0 : i32
    return %c0_i32, %c0_i32_0 : i32, i32
  }
  func.func @transform_5(%arg0: i32) -> (i32, i32) {
    %c0_i32 = arith.constant 0 : i32
    %c0_i32_0 = arith.constant 0 : i32
    %c0_i32_1 = arith.constant 0 : i32
    return %c0_i32, %c0_i32_0 : i32, i32
  }
  func.func @transform_6(%arg0: i32) -> (i32, i32) {
    %c0_i32 = arith.constant 0 : i32
    %c0_i32_0 = arith.constant 0 : i32
    %c0_i32_1 = arith.constant 0 : i32
    return %c0_i32, %c0_i32_0 : i32, i32
  }
  func.func @transform_7(%arg0: i32) -> (i32, i32) {
    %c0_i32 = arith.constant 0 : i32
    %c0_i32_0 = arith.constant 0 : i32
    return %arg0, %c0_i32 : i32, i32
  }
}

</mosaic_0001>

<llo_original>
// kernel: tpu_custom_call.1
$region0: #{tpu_custom_call.1}
  #allocation0 [shape = 'u32[]', space=smem, size = 0x4, offset = 0x4, fixed_abs, tag = 'smem constant byte address 0x4 - core index']
  #allocation1 [shape = 'u32[144,128]{1,0:T(1,128)}', space=vmem, size = 0x12000, scoped, tag = 'internal scratch']
  %s0 = inlined_call_operand.vmem [shape: f32[256,32], index: 0, kind: input, shape index: {}]
  %s1 = inlined_call_operand.vmem [shape: bf16[32,64], index: 1, kind: input, shape index: {}]
  %s2 = inlined_call_operand.vmem [shape: f32[1,64], index: 2, kind: input, shape index: {}]
  %s3 = inlined_call_operand.vmem [shape: bf16[64,64], index: 3, kind: input, shape index: {}]
  %s4 = inlined_call_operand.vmem [shape: f32[1,64], index: 4, kind: input, shape index: {}]
  %s5 = inlined_call_operand.vmem [shape: bf16[64,256], index: 5, kind: input, shape index: {}]
  %s6 = inlined_call_operand.vmem [shape: f32[1,256], index: 6, kind: input, shape index: {}]
  %s7 = inlined_call_operand.hbm [shape: f32[256,256], index: 7, kind: output, shape index: {}]
  %s8 = sld [smem:[#allocation0]]
  $region38: #{tpu_custom_call.1} parent=0
    _
  %s10 = ssub.s32 1, %s8
  %s11 = scalar_select 0, %s10, %s8
  $region1: #{tpu_custom_call.1} parent=0
    #allocation2 [shape = 'u8[262144]{0}', space=vmem, size = 0x40000, scoped, tag = 'output window, operand 0, single buffered']
    #allocation3 [shape = 's32[1]{0}', space=sflag, size = 0x4, scoped, tag = 'scoped memory for tpu_custom_call.1']
    %12 = vsyncpa [#allocation3], 0
    // Predicated region
    $region2: #{tpu_custom_call.1} parent=1 // pred_check
      _
    $region3: #{tpu_custom_call.1} parent=1 // pred_check_branch
      %14 = sbr.rel (0) target = $region5
    $region4: #{tpu_custom_call.1} parent=1 // pred_region
      _
    $region5: #{tpu_custom_call.1} parent=1 // pred_fallthru
      _
    // Predicated region
    $region6: #{tpu_custom_call.1} parent=1 // pred_check
      _
    $region7: #{tpu_custom_call.1} parent=1 // pred_check_branch
      %16 = sbr.rel (0) target = $region9
    $region8: #{tpu_custom_call.1} parent=1 // pred_region
      _
    $region9: #{tpu_custom_call.1} parent=1 // pred_fallthru
      _
    // Predicated region
    $region10: #{tpu_custom_call.1} parent=1 // pred_check
      _
    $region11: #{tpu_custom_call.1} parent=1 // pred_check_branch
      %18 = sbr.rel (0) target = $region13
    $region12: #{tpu_custom_call.1} parent=1 // pred_region
      _
    $region13: #{tpu_custom_call.1} parent=1 // pred_fallthru
      _
    // Predicated region
    $region14: #{tpu_custom_call.1} parent=1 // pred_check
      _
    $region15: #{tpu_custom_call.1} parent=1 // pred_check_branch
      %20 = sbr.rel (0) target = $region17
    $region16: #{tpu_custom_call.1} parent=1 // pred_region
      _
    $region17: #{tpu_custom_call.1} parent=1 // pred_fallthru
      _
    // Predicated region
    $region18: #{tpu_custom_call.1} parent=1 // pred_check
      _
    $region19: #{tpu_custom_call.1} parent=1 // pred_check_branch
      %22 = sbr.rel (0) target = $region21
    $region20: #{tpu_custom_call.1} parent=1 // pred_region
      _
    $region21: #{tpu_custom_call.1} parent=1 // pred_fallthru
      _
    // Predicated region
    $region22: #{tpu_custom_call.1} parent=1 // pred_check
      _
    $region23: #{tpu_custom_call.1} parent=1 // pred_check_branch
      %24 = sbr.rel (0) target = $region25
    $region24: #{tpu_custom_call.1} parent=1 // pred_region
      _
    $region25: #{tpu_custom_call.1} parent=1 // pred_fallthru
      _
    // Predicated region
    $region26: #{tpu_custom_call.1} parent=1 // pred_check
      _
    $region27: #{tpu_custom_call.1} parent=1 // pred_check_branch
      %26 = sbr.rel (0) target = $region29
    $region28: #{tpu_custom_call.1} parent=1 // pred_region
      _
    $region29: #{tpu_custom_call.1} parent=1 // pred_fallthru
      _
    %v28 = vld [vmem:[%s0] sm:$0xff]
    %v29 = vld [vmem:[%s0 + $0x8] sm:$0xff]
    %v30 = vld [vmem:[%s0 + $0x10] sm:$0xff]
    %v31 = vld [vmem:[%s0 + $0x18] sm:$0xff]
    %v32 = vld [vmem:[%s0 + $0x20] sm:$0xff]
    %v33 = vld [vmem:[%s0 + $0x28] sm:$0xff]
    %v34 = vld [vmem:[%s0 + $0x30] sm:$0xff]
    %v35 = vld [vmem:[%s0 + $0x38] sm:$0xff]
    %v36 = vld [vmem:[%s0 + $0x40] sm:$0xff]
    %v37 = vld [vmem:[%s0 + $0x48] sm:$0xff]
    %v38 = vld [vmem:[%s0 + $0x50] sm:$0xff]
    %v39 = vld [vmem:[%s0 + $0x58] sm:$0xff]
    %v40 = vld [vmem:[%s0 + $0x60] sm:$0xff]
    %v41 = vld [vmem:[%s0 + $0x68] sm:$0xff]
    %v42 = vld [vmem:[%s0 + $0x70] sm:$0xff]
    %v43 = vld [vmem:[%s0 + $0x78] sm:$0xff]
    %v44 = vld [vmem:[%s0 + $0x80] sm:$0xff]
    %v45 = vld [vmem:[%s0 + $0x88] sm:$0xff]
    %v46 = vld [vmem:[%s0 + $0x90] sm:$0xff]
    %v47 = vld [vmem:[%s0 + $0x98] sm:$0xff]
    %v48 = vld [vmem:[%s0 + $0xa0] sm:$0xff]
    %v49 = vld [vmem:[%s0 + $0xa8] sm:$0xff]
    %v50 = vld [vmem:[%s0 + $0xb0] sm:$0xff]
    %v51 = vld [vmem:[%s0 + $0xb8] sm:$0xff]
    %v52 = vld [vmem:[%s0 + $0xc0] sm:$0xff]
    %v53 = vld [vmem:[%s0 + $0xc8] sm:$0xff]
    %v54 = vld [vmem:[%s0 + $0xd0] sm:$0xff]
    %v55 = vld [vmem:[%s0 + $0xd8] sm:$0xff]
    %v56 = vld [vmem:[%s0 + $0xe0] sm:$0xff]
    %v57 = vld [vmem:[%s0 + $0xe8] sm:$0xff]
    %v58 = vld [vmem:[%s0 + $0xf0] sm:$0xff]
    %v59 = vld [vmem:[%s0 + $0xf8] sm:$0xff]
    %v60 = vpack.c.bf16 %v29, %v28
    %v61 = vpack.c.bf16 %v31, %v30
    %v62 = vpack.c.bf16 %v33, %v32
    %v63 = vpack.c.bf16 %v35, %v34
    %v64 = vpack.c.bf16 %v37, %v36
    %v65 = vpack.c.bf16 %v39, %v38
    %v66 = vpack.c.bf16 %v41, %v40
    %v67 = vpack.c.bf16 %v43, %v42
    %v68 = vpack.c.bf16 %v45, %v44
    %v69 = vpack.c.bf16 %v47, %v46
    %v70 = vpack.c.bf16 %v49, %v48
    %v71 = vpack.c.bf16 %v51, %v50
    %v72 = vpack.c.bf16 %v53, %v52
    %v73 = vpack.c.bf16 %v55, %v54
    %v74 = vpack.c.bf16 %v57, %v56
    %v75 = vpack.c.bf16 %v59, %v58
    %v76 = vld [vmem:[%s1] sm:$0xf]
    %v77 = vld [vmem:[%s1 + $0x4] sm:$0xf]
    %v78 = vld [vmem:[%s1 + $0x8] sm:$0xf]
    %v79 = vld [vmem:[%s1 + $0xc] sm:$0xf]
    %v80 = vld [vmem:[%s2] sm:$0x1]
    %v82 = vlaneseq
    %v83 = vshrl.u32 %v82, 7
    %v84 = vsub.s32 0, %v83
    %v85 = vrot.slane %v80, %v84
    %v91 = vunpack.c.l.b16 %v76
    %v92 = vunpack.c.l.b16 %v77
    %v93 = vunpack.c.l.b16 %v78
    %v94 = vunpack.c.l.b16 %v79
    %v95 = vpack.c.b16 %v92, %v91
    %v96 = vpack.c.b16 %v94, %v93
    %vm99 = vcmask 261120
    %v101 = vsel %vm99, %v60, 0
    %v104 = vsel %vm99, %v61, 0
    %v107 = vsel %vm99, %v62, 0
    %v110 = vsel %vm99, %v63, 0
    %v113 = vsel %vm99, %v64, 0
    %v116 = vsel %vm99, %v65, 0
    %v119 = vsel %vm99, %v66, 0
    %v122 = vsel %vm99, %v67, 0
    %v125 = vsel %vm99, %v68, 0
    %v128 = vsel %vm99, %v69, 0
    %v131 = vsel %vm99, %v70, 0
    %v134 = vsel %vm99, %v71, 0
    %v137 = vsel %vm99, %v72, 0
    %v140 = vsel %vm99, %v73, 0
    %v143 = vsel %vm99, %v74, 0
    %v146 = vsel %vm99, %v75, 0
    %148 = vmatprep.subr.bf16.mxu0 0
    %149 = vmatpush1.bf16.msra.mxu0 %v95
    %150 = vmatprep.subr.bf16.mxu0 0
    %151 = vmatpush1.bf16.msra.mxu0 %v96
    %152 = vmatprep.subr.bf16.mxu0 0
    %153 = vmatpush1.bf16.msra.mxu0 0
    %154 = vmatprep.subr.bf16.mxu0 0
    %155 = vmatpush1.bf16.msra.mxu0 0
    %156 = vmatprep.subr.bf16.mxu0 0
    %157 = vmatpush1.bf16.msra.mxu0 0
    %158 = vmatprep.subr.bf16.mxu0 0
    %159 = vmatpush1.bf16.msra.mxu0 0
    %160 = vmatprep.subr.bf16.mxu0 0
    %161 = vmatpush1.bf16.msra.mxu0 0
    %162 = vmatprep.subr.bf16.mxu0 0
    %163 = vmatpush1.bf16.msra.mxu0 0
    %164 = vmatprep.subr.bf16.mxu0 0
    %165 = vmatpush1.bf16.msra.mxu0 0
    %166 = vmatprep.subr.bf16.mxu0 0
    %167 = vmatpush1.bf16.msra.mxu0 0
    %168 = vmatprep.subr.bf16.mxu0 0
    %169 = vmatpush1.bf16.msra.mxu0 0
    %170 = vmatprep.subr.bf16.mxu0 0
    %171 = vmatpush1.bf16.msra.mxu0 0
    %172 = vmatprep.subr.bf16.mxu0 0
    %173 = vmatpush1.bf16.msra.mxu0 0
    %174 = vmatprep.subr.bf16.mxu0 0
    %175 = vmatpush1.bf16.msra.mxu0 0
    %176 = vmatprep.subr.bf16.mxu0 0
    %177 = vmatpush1.bf16.msra.mxu0 0
    %178 = vmatprep.subr.bf16.mxu0 0
    %179 = vmatpush1.bf16.msra.mxu0 0
    %180 = vmatprep.mubr.bf16.mxu0 0
    %181 = vmatmul.mubr.bf16.gmra.mrb[0].mxu0 %v101
    %v182 = vpop.f32.mrb[0].mxu0
    %v183 = vadd.f32 %v85, %v182
    %v184 = vpop.f32.mrb[0].mxu0
    %v185 = vpop.f32.mrb[0].mxu0
    %v186 = vadd.f32 %v85, %v185
    %v187 = vpop.f32.mrb[0].mxu0
    %188 = vmatprep.mubr.bf16.mxu0 0
    %189 = vmatmul.mubr.bf16.gmra.mrb[0].mxu0 %v104
    %v190 = vpop.f32.mrb[0].mxu0
    %v191 = vadd.f32 %v85, %v190
    %v192 = vpop.f32.mrb[0].mxu0
    %v193 = vpop.f32.mrb[0].mxu0
    %v194 = vadd.f32 %v85, %v193
    %v195 = vpop.f32.mrb[0].mxu0
    %196 = vmatprep.mubr.bf16.mxu0 0
    %197 = vmatmul.mubr.bf16.gmra.mrb[0].mxu0 %v107
    %v198 = vpop.f32.mrb[0].mxu0
    %v199 = vadd.f32 %v85, %v198
    %v200 = vpop.f32.mrb[0].mxu0
    %v201 = vpop.f32.mrb[0].mxu0
    %v202 = vadd.f32 %v85, %v201
    %v203 = vpop.f32.mrb[0].mxu0
    %204 = vmatprep.mubr.bf16.mxu0 0
    %205 = vmatmul.mubr.bf16.gmra.mrb[0].mxu0 %v110
    %v206 = vpop.f32.mrb[0].mxu0
    %v207 = vadd.f32 %v85, %v206
    %v208 = vpop.f32.mrb[0].mxu0
    %v209 = vpop.f32.mrb[0].mxu0
    %v210 = vadd.f32 %v85, %v209
    %v211 = vpop.f32.mrb[0].mxu0
    %212 = vmatprep.mubr.bf16.mxu0 0
    %213 = vmatmul.mubr.bf16.gmra.mrb[0].mxu0 %v113
    %v214 = vpop.f32.mrb[0].mxu0
    %v215 = vadd.f32 %v85, %v214
    %v216 = vpop.f32.mrb[0].mxu0
    %v217 = vpop.f32.mrb[0].mxu0
    %v218 = vadd.f32 %v85, %v217
    %v219 = vpop.f32.mrb[0].mxu0
    %220 = vmatprep.mubr.bf16.mxu0 0
    %221 = vmatmul.mubr.bf16.gmra.mrb[0].mxu0 %v116
    %v222 = vpop.f32.mrb[0].mxu0
    %v223 = vadd.f32 %v85, %v222
    %v224 = vpop.f32.mrb[0].mxu0
    %v225 = vpop.f32.mrb[0].mxu0
    %v226 = vadd.f32 %v85, %v225
    %v227 = vpop.f32.mrb[0].mxu0
    %228 = vmatprep.mubr.bf16.mxu0 0
    %229 = vmatmul.mubr.bf16.gmra.mrb[0].mxu0 %v119
    %v230 = vpop.f32.mrb[0].mxu0
    %v231 = vadd.f32 %v85, %v230
    %v232 = vpop.f32.mrb[0].mxu0
    %v233 = vpop.f32.mrb[0].mxu0
    %v234 = vadd.f32 %v85, %v233
    %v235 = vpop.f32.mrb[0].mxu0
    %236 = vmatprep.mubr.bf16.mxu0 0
    %237 = vmatmul.mubr.bf16.gmra.mrb[0].mxu0 %v122
    %v238 = vpop.f32.mrb[0].mxu0
    %v239 = vadd.f32 %v85, %v238
    %v240 = vpop.f32.mrb[0].mxu0
    %v241 = vpop.f32.mrb[0].mxu0
    %v242 = vadd.f32 %v85, %v241
    %v243 = vpop.f32.mrb[0].mxu0
    %244 = vmatprep.mubr.bf16.mxu0 0
    %245 = vmatmul.mubr.bf16.gmra.mrb[0].mxu0 %v125
    %v246 = vpop.f32.mrb[0].mxu0
    %v247 = vadd.f32 %v85, %v246
    %v248 = vpop.f32.mrb[0].mxu0
    %v249 = vpop.f32.mrb[0].mxu0
    %v250 = vadd.f32 %v85, %v249
    %v251 = vpop.f32.mrb[0].mxu0
    %252 = vmatprep.mubr.bf16.mxu0 0
    %253 = vmatmul.mubr.bf16.gmra.mrb[0].mxu0 %v128
    %v254 = vpop.f32.mrb[0].mxu0
    %v255 = vadd.f32 %v85, %v254
    %v256 = vpop.f32.mrb[0].mxu0
    %v257 = vpop.f32.mrb[0].mxu0
    %v258 = vadd.f32 %v85, %v257
    %v259 = vpop.f32.mrb[0].mxu0
    %260 = vmatprep.mubr.bf16.mxu0 0
    %261 = vmatmul.mubr.bf16.gmra.mrb[0].mxu0 %v131
    %v262 = vpop.f32.mrb[0].mxu0
    %v263 = vadd.f32 %v85, %v262
    %v264 = vpop.f32.mrb[0].mxu0
    %v265 = vpop.f32.mrb[0].mxu0
    %v266 = vadd.f32 %v85, %v265
    %v267 = vpop.f32.mrb[0].mxu0
    %268 = vmatprep.mubr.bf16.mxu0 0
    %269 = vmatmul.mubr.bf16.gmra.mrb[0].mxu0 %v134
    %v270 = vpop.f32.mrb[0].mxu0
    %v271 = vadd.f32 %v85, %v270
    %v272 = vpop.f32.mrb[0].mxu0
    %v273 = vpop.f32.mrb[0].mxu0
    %v274 = vadd.f32 %v85, %v273
    %v275 = vpop.f32.mrb[0].mxu0
    %276 = vmatprep.mubr.bf16.mxu0 0
    %277 = vmatmul.mubr.bf16.gmra.mrb[0].mxu0 %v137
    %v278 = vpop.f32.mrb[0].mxu0
    %v279 = vadd.f32 %v85, %v278
    %v280 = vpop.f32.mrb[0].mxu0
    %v281 = vpop.f32.mrb[0].mxu0
    %v282 = vadd.f32 %v85, %v281
    %v283 = vpop.f32.mrb[0].mxu0
    %284 = vmatprep.mubr.bf16.mxu0 0
    %285 = vmatmul.mubr.bf16.gmra.mrb[0].mxu0 %v140
    %v286 = vpop.f32.mrb[0].mxu0
    %v287 = vadd.f32 %v85, %v286
    %v288 = vpop.f32.mrb[0].mxu0
    %v289 = vpop.f32.mrb[0].mxu0
    %v290 = vadd.f32 %v85, %v289
    %v291 = vpop.f32.mrb[0].mxu0
    %292 = vmatprep.mubr.bf16.mxu0 0
    %293 = vmatmul.mubr.bf16.gmra.mrb[0].mxu0 %v143
    %v294 = vpop.f32.mrb[0].mxu0
    %v295 = vadd.f32 %v85, %v294
    %v296 = vpop.f32.mrb[0].mxu0
    %v297 = vpop.f32.mrb[0].mxu0
    %v298 = vadd.f32 %v85, %v297
    %v299 = vpop.f32.mrb[0].mxu0
    %300 = vmatprep.mubr.bf16.mxu0 0
    %301 = vmatmul.mubr.bf16.gmra.mrb[0].mxu0 %v146
    %v302 = vpop.f32.mrb[0].mxu0
    %v303 = vadd.f32 %v85, %v302
    %v304 = vpop.f32.mrb[0].mxu0
    %v305 = vpop.f32.mrb[0].mxu0
    %v306 = vadd.f32 %v85, %v305
    %v307 = vpop.f32.mrb[0].mxu0
    %308 = vdwg.mxu0
    %v309 = vmax.f32 %v183, 0.0
    %v310 = vmax.f32 %v186, 0.0
    %v311 = vmax.f32 %v191, 0.0
    %v312 = vmax.f32 %v194, 0.0
    %v313 = vmax.f32 %v199, 0.0
    %v314 = vmax.f32 %v202, 0.0
    %v315 = vmax.f32 %v207, 0.0
    %v316 = vmax.f32 %v210, 0.0
    %v317 = vmax.f32 %v215, 0.0
    %v318 = vmax.f32 %v218, 0.0
    %v319 = vmax.f32 %v223, 0.0
    %v320 = vmax.f32 %v226, 0.0
    %v321 = vmax.f32 %v231, 0.0
    %v322 = vmax.f32 %v234, 0.0
    %v323 = vmax.f32 %v239, 0.0
    %v324 = vmax.f32 %v242, 0.0
    %v325 = vmax.f32 %v247, 0.0
    %v326 = vmax.f32 %v250, 0.0
    %v327 = vmax.f32 %v255, 0.0
    %v328 = vmax.f32 %v258, 0.0
    %v329 = vmax.f32 %v263, 0.0
    %v330 = vmax.f32 %v266, 0.0
    %v331 = vmax.f32 %v271, 0.0
    %v332 = vmax.f32 %v274, 0.0
    %v333 = vmax.f32 %v279, 0.0
    %v334 = vmax.f32 %v282, 0.0
    %v335 = vmax.f32 %v287, 0.0
    %v336 = vmax.f32 %v290, 0.0
    %v337 = vmax.f32 %v295, 0.0
    %v338 = vmax.f32 %v298, 0.0
    %v339 = vmax.f32 %v303, 0.0
    %v340 = vmax.f32 %v306, 0.0
    %v341 = vpack.c.bf16 %v310, %v309
    %v342 = vpack.c.bf16 %v312, %v311
    %v343 = vpack.c.bf16 %v314, %v313
    %v344 = vpack.c.bf16 %v316, %v315
    %v345 = vpack.c.bf16 %v318, %v317
    %v346 = vpack.c.bf16 %v320, %v319
    %v347 = vpack.c.bf16 %v322, %v321
    %v348 = vpack.c.bf16 %v324, %v323
    %v349 = vpack.c.bf16 %v326, %v325
    %v350 = vpack.c.bf16 %v328, %v327
    %v351 = vpack.c.bf16 %v330, %v329
    %v352 = vpack.c.bf16 %v332, %v331
    %v353 = vpack.c.bf16 %v334, %v333
    %v354 = vpack.c.bf16 %v336, %v335
    %v355 = vpack.c.bf16 %v338, %v337
    %v356 = vpack.c.bf16 %v340, %v339
    %v357 = vld [vmem:[%s3] sm:$0xf]
    %v358 = vld [vmem:[%s3 + $0x4] sm:$0xf]
    %v359 = vld [vmem:[%s3 + $0x8] sm:$0xf]
    %v360 = vld [vmem:[%s3 + $0xc] sm:$0xf]
    %v361 = vld [vmem:[%s3 + $0x10] sm:$0xf]
    %v362 = vld [vmem:[%s3 + $0x14] sm:$0xf]
    %v363 = vld [vmem:[%s3 + $0x18] sm:$0xf]
    %v364 = vld [vmem:[%s3 + $0x1c] sm:$0xf]
    %v365 = vld [vmem:[%s4] sm:$0x1]
    %v367 = vlaneseq
    %v368 = vshrl.u32 %v367, 7
    %v369 = vsub.s32 0, %v368
    %v370 = vrot.slane %v365, %v369
    %v380 = vunpack.c.l.b16 %v357
    %v381 = vunpack.c.l.b16 %v358
    %v382 = vunpack.c.l.b16 %v359
    %v383 = vunpack.c.l.b16 %v360
    %v384 = vunpack.c.l.b16 %v361
    %v385 = vunpack.c.l.b16 %v362
    %v386 = vunpack.c.l.b16 %v363
    %v387 = vunpack.c.l.b16 %v364
    %v388 = vpack.c.b16 %v381, %v380
    %v389 = vpack.c.b16 %v383, %v382
    %v390 = vpack.c.b16 %v385, %v384
    %v391 = vpack.c.b16 %v387, %v386
    %vm396 = vcmask 523264
    %v398 = vsel %vm396, %v341, 0
    %v401 = vsel %vm396, %v342, 0
    %v404 = vsel %vm396, %v343, 0
    %v407 = vsel %vm396, %v344, 0
    %v410 = vsel %vm396, %v345, 0
    %v413 = vsel %vm396, %v346, 0
    %v416 = vsel %vm396, %v347, 0
    %v419 = vsel %vm396, %v348, 0
    %v422 = vsel %vm396, %v349, 0
    %v425 = vsel %vm396, %v350, 0
    %v428 = vsel %vm396, %v351, 0
    %v431 = vsel %vm396, %v352, 0
    %v434 = vsel %vm396, %v353, 0
    %v437 = vsel %vm396, %v354, 0
    %v440 = vsel %vm396, %v355, 0
    %v443 = vsel %vm396, %v356, 0
    %445 = vmatprep.subr.bf16.mxu0 0
    %446 = vmatpush1.bf16.msra.mxu0 %v388
    %447 = vmatprep.subr.bf16.mxu0 0
    %448 = vmatpush1.bf16.msra.mxu0 %v389
    %449 = vmatprep.subr.bf16.mxu0 0
    %450 = vmatpush1.bf16.msra.mxu0 %v390
    %451 = vmatprep.subr.bf16.mxu0 0
    %452 = vmatpush1.bf16.msra.mxu0 %v391
    %453 = vmatprep.subr.bf16.mxu0 0
    %454 = vmatpush1.bf16.msra.mxu0 0
    %455 = vmatprep.subr.bf16.mxu0 0
    %456 = vmatpush1.bf16.msra.mxu0 0
    %457 = vmatprep.subr.bf16.mxu0 0
    %458 = vmatpush1.bf16.msra.mxu0 0
    %459 = vmatprep.subr.bf16.mxu0 0
    %460 = vmatpush1.bf16.msra.mxu0 0
    %461 = vmatprep.subr.bf16.mxu0 0
    %462 = vmatpush1.bf16.msra.mxu0 0
    %463 = vmatprep.subr.bf16.mxu0 0
    %464 = vmatpush1.bf16.msra.mxu0 0
    %465 = vmatprep.subr.bf16.mxu0 0
    %466 = vmatpush1.bf16.msra.mxu0 0
    %467 = vmatprep.subr.bf16.mxu0 0
    %468 = vmatpush1.bf16.msra.mxu0 0
    %469 = vmatprep.subr.bf16.mxu0 0
    %470 = vmatpush1.bf16.msra.mxu0 0
    %471 = vmatprep.subr.bf16.mxu0 0
    %472 = vmatpush1.bf16.msra.mxu0 0
    %473 = vmatprep.subr.bf16.mxu0 0
    %474 = vmatpush1.bf16.msra.mxu0 0
    %475 = vmatprep.subr.bf16.mxu0 0
    %476 = vmatpush1.bf16.msra.mxu0 0
    %477 = vmatprep.mubr.bf16.mxu0 0
    %478 = vmatmul.mubr.bf16.gmra.mrb[0].mxu0 %v398
    %v479 = vpop.f32.mrb[0].mxu0
    %v480 = vadd.f32 %v370, %v479
    %v481 = vpop.f32.mrb[0].mxu0
    %v482 = vpop.f32.mrb[0].mxu0
    %v483 = vadd.f32 %v370, %v482
    %v484 = vpop.f32.mrb[0].mxu0
    %485 = vmatprep.mubr.bf16.mxu0 0
    %486 = vmatmul.mubr.bf16.gmra.mrb[0].mxu0 %v401
    %v487 = vpop.f32.mrb[0].mxu0
    %v488 = vadd.f32 %v370, %v487
    %v489 = vpop.f32.mrb[0].mxu0
    %v490 = vpop.f32.mrb[0].mxu0
    %v491 = vadd.f32 %v370, %v490
    %v492 = vpop.f32.mrb[0].mxu0
    %493 = vmatprep.mubr.bf16.mxu0 0
    %494 = vmatmul.mubr.bf16.gmra.mrb[0].mxu0 %v404
    %v495 = vpop.f32.mrb[0].mxu0
    %v496 = vadd.f32 %v370, %v495
    %v497 = vpop.f32.mrb[0].mxu0
    %v498 = vpop.f32.mrb[0].mxu0
    %v499 = vadd.f32 %v370, %v498
    %v500 = vpop.f32.mrb[0].mxu0
    %501 = vmatprep.mubr.bf16.mxu0 0
    %502 = vmatmul.mubr.bf16.gmra.mrb[0].mxu0 %v407
    %v503 = vpop.f32.mrb[0].mxu0
    %v504 = vadd.f32 %v370, %v503
    %v505 = vpop.f32.mrb[0].mxu0
    %v506 = vpop.f32.mrb[0].mxu0
    %v507 = vadd.f32 %v370, %v506
    %v508 = vpop.f32.mrb[0].mxu0
    %509 = vmatprep.mubr.bf16.mxu0 0
    %510 = vmatmul.mubr.bf16.gmra.mrb[0].mxu0 %v410
    %v511 = vpop.f32.mrb[0].mxu0
    %v512 = vadd.f32 %v370, %v511
    %v513 = vpop.f32.mrb[0].mxu0
    %v514 = vpop.f32.mrb[0].mxu0
    %v515 = vadd.f32 %v370, %v514
    %v516 = vpop.f32.mrb[0].mxu0
    %517 = vmatprep.mubr.bf16.mxu0 0
    %518 = vmatmul.mubr.bf16.gmra.mrb[0].mxu0 %v413
    %v519 = vpop.f32.mrb[0].mxu0
    %v520 = vadd.f32 %v370, %v519
    %v521 = vpop.f32.mrb[0].mxu0
    %v522 = vpop.f32.mrb[0].mxu0
    %v523 = vadd.f32 %v370, %v522
    %v524 = vpop.f32.mrb[0].mxu0
    %525 = vmatprep.mubr.bf16.mxu0 0
    %526 = vmatmul.mubr.bf16.gmra.mrb[0].mxu0 %v416
    %v527 = vpop.f32.mrb[0].mxu0
    %v528 = vadd.f32 %v370, %v527
    %v529 = vpop.f32.mrb[0].mxu0
    %v530 = vpop.f32.mrb[0].mxu0
    %v531 = vadd.f32 %v370, %v530
    %v532 = vpop.f32.mrb[0].mxu0
    %533 = vmatprep.mubr.bf16.mxu0 0
    %534 = vmatmul.mubr.bf16.gmra.mrb[0].mxu0 %v419
    %v535 = vpop.f32.mrb[0].mxu0
    %v536 = vadd.f32 %v370, %v535
    %v537 = vpop.f32.mrb[0].mxu0
    %v538 = vpop.f32.mrb[0].mxu0
    %v539 = vadd.f32 %v370, %v538
    %v540 = vpop.f32.mrb[0].mxu0
    %541 = vmatprep.mubr.bf16.mxu0 0
    %542 = vmatmul.mubr.bf16.gmra.mrb[0].mxu0 %v422
    %v543 = vpop.f32.mrb[0].mxu0
    %v544 = vadd.f32 %v370, %v543
    %v545 = vpop.f32.mrb[0].mxu0
    %v546 = vpop.f32.mrb[0].mxu0
    %v547 = vadd.f32 %v370, %v546
    %v548 = vpop.f32.mrb[0].mxu0
    %549 = vmatprep.mubr.bf16.mxu0 0
    %550 = vmatmul.mubr.bf16.gmra.mrb[0].mxu0 %v425
    %v551 = vpop.f32.mrb[0].mxu0
    %v552 = vadd.f32 %v370, %v551
    %v553 = vpop.f32.mrb[0].mxu0
    %v554 = vpop.f32.mrb[0].mxu0
    %v555 = vadd.f32 %v370, %v554
    %v556 = vpop.f32.mrb[0].mxu0
    %557 = vmatprep.mubr.bf16.mxu0 0
    %558 = vmatmul.mubr.bf16.gmra.mrb[0].mxu0 %v428
    %v559 = vpop.f32.mrb[0].mxu0
    %v560 = vadd.f32 %v370, %v559
    %v561 = vpop.f32.mrb[0].mxu0
    %v562 = vpop.f32.mrb[0].mxu0
    %v563 = vadd.f32 %v370, %v562
    %v564 = vpop.f32.mrb[0].mxu0
    %565 = vmatprep.mubr.bf16.mxu0 0
    %566 = vmatmul.mubr.bf16.gmra.mrb[0].mxu0 %v431
    %v567 = vpop.f32.mrb[0].mxu0
    %v568 = vadd.f32 %v370, %v567
    %v569 = vpop.f32.mrb[0].mxu0
    %v570 = vpop.f32.mrb[0].mxu0
    %v571 = vadd.f32 %v370, %v570
    %v572 = vpop.f32.mrb[0].mxu0
    %573 = vmatprep.mubr.bf16.mxu0 0
    %574 = vmatmul.mubr.bf16.gmra.mrb[0].mxu0 %v434
    %v575 = vpop.f32.mrb[0].mxu0
    %v576 = vadd.f32 %v370, %v575
    %v577 = vpop.f32.mrb[0].mxu0
    %v578 = vpop.f32.mrb[0].mxu0
    %v579 = vadd.f32 %v370, %v578
    %v580 = vpop.f32.mrb[0].mxu0
    %581 = vmatprep.mubr.bf16.mxu0 0
    %582 = vmatmul.mubr.bf16.gmra.mrb[0].mxu0 %v437
    %v583 = vpop.f32.mrb[0].mxu0
    %v584 = vadd.f32 %v370, %v583
    %v585 = vpop.f32.mrb[0].mxu0
    %v586 = vpop.f32.mrb[0].mxu0
    %v587 = vadd.f32 %v370, %v586
    %v588 = vpop.f32.mrb[0].mxu0
    %589 = vmatprep.mubr.bf16.mxu0 0
    %590 = vmatmul.mubr.bf16.gmra.mrb[0].mxu0 %v440
    %v591 = vpop.f32.mrb[0].mxu0
    %v592 = vadd.f32 %v370, %v591
    %v593 = vpop.f32.mrb[0].mxu0
    %v594 = vpop.f32.mrb[0].mxu0
    %v595 = vadd.f32 %v370, %v594
    %v596 = vpop.f32.mrb[0].mxu0
    %597 = vmatprep.mubr.bf16.mxu0 0
    %598 = vmatmul.mubr.bf16.gmra.mrb[0].mxu0 %v443
    %v599 = vpop.f32.mrb[0].mxu0
    %v600 = vadd.f32 %v370, %v599
    %v601 = vpop.f32.mrb[0].mxu0
    %v602 = vpop.f32.mrb[0].mxu0
    %v603 = vadd.f32 %v370, %v602
    %v604 = vpop.f32.mrb[0].mxu0
    %605 = vdwg.mxu0
    %v606 = vmax.f32 %v480, 0.0
    %v607 = vmax.f32 %v483, 0.0
    %v608 = vmax.f32 %v488, 0.0
    %v609 = vmax.f32 %v491, 0.0
    %v610 = vmax.f32 %v496, 0.0
    %v611 = vmax.f32 %v499, 0.0
    %v612 = vmax.f32 %v504, 0.0
    %v613 = vmax.f32 %v507, 0.0
    %v614 = vmax.f32 %v512, 0.0
    %v615 = vmax.f32 %v515, 0.0
    %v616 = vmax.f32 %v520, 0.0
    %v617 = vmax.f32 %v523, 0.0
    %v618 = vmax.f32 %v528, 0.0
    %v619 = vmax.f32 %v531, 0.0
    %v620 = vmax.f32 %v536, 0.0
    %v621 = vmax.f32 %v539, 0.0
    %v622 = vmax.f32 %v544, 0.0
    %v623 = vmax.f32 %v547, 0.0
    %v624 = vmax.f32 %v552, 0.0
    %v625 = vmax.f32 %v555, 0.0
    %v626 = vmax.f32 %v560, 0.0
    %v627 = vmax.f32 %v563, 0.0
    %v628 = vmax.f32 %v568, 0.0
    %v629 = vmax.f32 %v571, 0.0
    %v630 = vmax.f32 %v576, 0.0
    %v631 = vmax.f32 %v579, 0.0
    %v632 = vmax.f32 %v584, 0.0
    %v633 = vmax.f32 %v587, 0.0
    %v634 = vmax.f32 %v592, 0.0
    %v635 = vmax.f32 %v595, 0.0
    %v636 = vmax.f32 %v600, 0.0
    %v637 = vmax.f32 %v603, 0.0
    %v638 = vpack.c.bf16 %v607, %v606
    %v639 = vpack.c.bf16 %v609, %v608
    %v640 = vpack.c.bf16 %v611, %v610
    %v641 = vpack.c.bf16 %v613, %v612
    %v642 = vpack.c.bf16 %v615, %v614
    %v643 = vpack.c.bf16 %v617, %v616
    %v644 = vpack.c.bf16 %v619, %v618
    %v645 = vpack.c.bf16 %v621, %v620
    %v646 = vpack.c.bf16 %v623, %v622
    %v647 = vpack.c.bf16 %v625, %v624
    %v648 = vpack.c.bf16 %v627, %v626
    %v649 = vpack.c.bf16 %v629, %v628
    %v650 = vpack.c.bf16 %v631, %v630
    %v651 = vpack.c.bf16 %v633, %v632
    %v652 = vpack.c.bf16 %v635, %v634
    %v653 = vpack.c.bf16 %v637, %v636
    %v654 = vld [vmem:[%s5] sm:$0xff]
    %v655 = vld [vmem:[%s5 + $0x8] sm:$0xff]
    %v656 = vld [vmem:[%s5 + $0x10] sm:$0xff]
    %v657 = vld [vmem:[%s5 + $0x18] sm:$0xff]
    %v658 = vld [vmem:[%s5 + $0x20] sm:$0xff]
    %v659 = vld [vmem:[%s5 + $0x28] sm:$0xff]
    %v660 = vld [vmem:[%s5 + $0x30] sm:$0xff]
    %v661 = vld [vmem:[%s5 + $0x38] sm:$0xff]
    %v662 = vld [vmem:[%s6] sm:$0x3]
    %v664 = vlaneseq
    %v665 = vshrl.u32 %v664, 7
    %v666 = vsub.s32 0, %v665
    %v667 = vrot.slane %v662, %v666
    %v668 = vlaneseq
    %v669 = vshrl.u32 %v668, 7
    %v670 = vsub.s32 1, %v669
    %v671 = vrot.slane %v662, %v670
    %v682 = vunpack.c.l.b16 %v654
    %v683 = vunpack.c.h.b16 %v654
    %v684 = vunpack.c.l.b16 %v655
    %v685 = vunpack.c.h.b16 %v655
    %v686 = vunpack.c.l.b16 %v656
    %v687 = vunpack.c.h.b16 %v656
    %v688 = vunpack.c.l.b16 %v657
    %v689 = vunpack.c.h.b16 %v657
    %v690 = vunpack.c.l.b16 %v658
    %v691 = vunpack.c.h.b16 %v658
    %v692 = vunpack.c.l.b16 %v659
    %v693 = vunpack.c.h.b16 %v659
    %v694 = vunpack.c.l.b16 %v660
    %v695 = vunpack.c.h.b16 %v660
    %v696 = vunpack.c.l.b16 %v661
    %v697 = vunpack.c.h.b16 %v661
    %v698 = vpack.c.b16 %v684, %v682
    %v699 = vpack.c.b16 %v685, %v683
    %v700 = vpack.c.b16 %v688, %v686
    %v701 = vpack.c.b16 %v689, %v687
    %v702 = vpack.c.b16 %v692, %v690
    %v703 = vpack.c.b16 %v693, %v691
    %v704 = vpack.c.b16 %v696, %v694
    %v705 = vpack.c.b16 %v697, %v695
    %v715 = vsel %vm396, %v638, 0
    %v718 = vsel %vm396, %v639, 0
    %v721 = vsel %vm396, %v640, 0
    %v724 = vsel %vm396, %v641, 0
    %v727 = vsel %vm396, %v642, 0
    %v730 = vsel %vm396, %v643, 0
    %v733 = vsel %vm396, %v644, 0
    %v736 = vsel %vm396, %v645, 0
    %v739 = vsel %vm396, %v646, 0
    %v742 = vsel %vm396, %v647, 0
    %v745 = vsel %vm396, %v648, 0
    %v748 = vsel %vm396, %v649, 0
    %v751 = vsel %vm396, %v650, 0
    %v754 = vsel %vm396, %v651, 0
    %v757 = vsel %vm396, %v652, 0
    %v760 = vsel %vm396, %v653, 0
    %762 = vmatprep.subr.bf16.mxu0 %v699
    %763 = vmatpush1.bf16.msra.mxu0 %v698
    %764 = vmatprep.subr.bf16.mxu0 %v701
    %765 = vmatpush1.bf16.msra.mxu0 %v700
    %766 = vmatprep.subr.bf16.mxu0 %v703
    %767 = vmatpush1.bf16.msra.mxu0 %v702
    %768 = vmatprep.subr.bf16.mxu0 %v705
    %769 = vmatpush1.bf16.msra.mxu0 %v704
    %770 = vmatprep.subr.bf16.mxu0 0
    %771 = vmatpush1.bf16.msra.mxu0 0
    %772 = vmatprep.subr.bf16.mxu0 0
    %773 = vmatpush1.bf16.msra.mxu0 0
    %774 = vmatprep.subr.bf16.mxu0 0
    %775 = vmatpush1.bf16.msra.mxu0 0
    %776 = vmatprep.subr.bf16.mxu0 0
    %777 = vmatpush1.bf16.msra.mxu0 0
    %778 = vmatprep.subr.bf16.mxu0 0
    %779 = vmatpush1.bf16.msra.mxu0 0
    %780 = vmatprep.subr.bf16.mxu0 0
    %781 = vmatpush1.bf16.msra.mxu0 0
    %782 = vmatprep.subr.bf16.mxu0 0
    %783 = vmatpush1.bf16.msra.mxu0 0
    %784 = vmatprep.subr.bf16.mxu0 0
    %785 = vmatpush1.bf16.msra.mxu0 0
    %786 = vmatprep.subr.bf16.mxu0 0
    %787 = vmatpush1.bf16.msra.mxu0 0
    %788 = vmatprep.subr.bf16.mxu0 0
    %789 = vmatpush1.bf16.msra.mxu0 0
    %790 = vmatprep.subr.bf16.mxu0 0
    %791 = vmatpush1.bf16.msra.mxu0 0
    %792 = vmatprep.subr.bf16.mxu0 0
    %793 = vmatpush1.bf16.msra.mxu0 0
    %794 = vmatprep.mubr.bf16.mxu0 0
    %795 = vmatmul.mubr.bf16.gmra.mrb[0].mxu0 %v715
    %v796 = vpop.f32.mrb[0].mxu0
    %v797 = vadd.f32 %v667, %v796
    %v798 = vpop.f32.mrb[0].mxu0
    %v799 = vadd.f32 %v671, %v798
    %v800 = vpop.f32.mrb[0].mxu0
    %v801 = vadd.f32 %v667, %v800
    %v802 = vpop.f32.mrb[0].mxu0
    %v803 = vadd.f32 %v671, %v802
    %804 = vmatprep.mubr.bf16.mxu0 0
    %805 = vmatmul.mubr.bf16.gmra.mrb[0].mxu0 %v718
    %v806 = vpop.f32.mrb[0].mxu0
    %v807 = vadd.f32 %v667, %v806
    %v808 = vpop.f32.mrb[0].mxu0
    %v809 = vadd.f32 %v671, %v808
    %v810 = vpop.f32.mrb[0].mxu0
    %v811 = vadd.f32 %v667, %v810
    %v812 = vpop.f32.mrb[0].mxu0
    %v813 = vadd.f32 %v671, %v812
    %814 = vmatprep.mubr.bf16.mxu0 0
    %815 = vmatmul.mubr.bf16.gmra.mrb[0].mxu0 %v721
    %v816 = vpop.f32.mrb[0].mxu0
    %v817 = vadd.f32 %v667, %v816
    %v818 = vpop.f32.mrb[0].mxu0
    %v819 = vadd.f32 %v671, %v818
    %v820 = vpop.f32.mrb[0].mxu0
    %v821 = vadd.f32 %v667, %v820
    %v822 = vpop.f32.mrb[0].mxu0
    %v823 = vadd.f32 %v671, %v822
    %824 = vmatprep.mubr.bf16.mxu0 0
    %825 = vmatmul.mubr.bf16.gmra.mrb[0].mxu0 %v724
    %v826 = vpop.f32.mrb[0].mxu0
    %v827 = vadd.f32 %v667, %v826
    %v828 = vpop.f32.mrb[0].mxu0
    %v829 = vadd.f32 %v671, %v828
    %v830 = vpop.f32.mrb[0].mxu0
    %v831 = vadd.f32 %v667, %v830
    %v832 = vpop.f32.mrb[0].mxu0
    %v833 = vadd.f32 %v671, %v832
    %834 = vmatprep.mubr.bf16.mxu0 0
    %835 = vmatmul.mubr.bf16.gmra.mrb[0].mxu0 %v727
    %v836 = vpop.f32.mrb[0].mxu0
    %v837 = vadd.f32 %v667, %v836
    %v838 = vpop.f32.mrb[0].mxu0
    %v839 = vadd.f32 %v671, %v838
    %v840 = vpop.f32.mrb[0].mxu0
    %v841 = vadd.f32 %v667, %v840
    %v842 = vpop.f32.mrb[0].mxu0
    %v843 = vadd.f32 %v671, %v842
    %844 = vmatprep.mubr.bf16.mxu0 0
    %845 = vmatmul.mubr.bf16.gmra.mrb[0].mxu0 %v730
    %v846 = vpop.f32.mrb[0].mxu0
    %v847 = vadd.f32 %v667, %v846
    %v848 = vpop.f32.mrb[0].mxu0
    %v849 = vadd.f32 %v671, %v848
    %v850 = vpop.f32.mrb[0].mxu0
    %v851 = vadd.f32 %v667, %v850
    %v852 = vpop.f32.mrb[0].mxu0
    %v853 = vadd.f32 %v671, %v852
    %854 = vmatprep.mubr.bf16.mxu0 0
    %855 = vmatmul.mubr.bf16.gmra.mrb[0].mxu0 %v733
    %v856 = vpop.f32.mrb[0].mxu0
    %v857 = vadd.f32 %v667, %v856
    %v858 = vpop.f32.mrb[0].mxu0
    %v859 = vadd.f32 %v671, %v858
    %v860 = vpop.f32.mrb[0].mxu0
    %v861 = vadd.f32 %v667, %v860
    %v862 = vpop.f32.mrb[0].mxu0
    %v863 = vadd.f32 %v671, %v862
    %864 = vmatprep.mubr.bf16.mxu0 0
    %865 = vmatmul.mubr.bf16.gmra.mrb[0].mxu0 %v736
    %v866 = vpop.f32.mrb[0].mxu0
    %v867 = vadd.f32 %v667, %v866
    %v868 = vpop.f32.mrb[0].mxu0
    %v869 = vadd.f32 %v671, %v868
    %v870 = vpop.f32.mrb[0].mxu0
    %v871 = vadd.f32 %v667, %v870
    %v872 = vpop.f32.mrb[0].mxu0
    %v873 = vadd.f32 %v671, %v872
    %874 = vmatprep.mubr.bf16.mxu0 0
    %875 = vmatmul.mubr.bf16.gmra.mrb[0].mxu0 %v739
    %v876 = vpop.f32.mrb[0].mxu0
    %v877 = vadd.f32 %v667, %v876
    %v878 = vpop.f32.mrb[0].mxu0
    %v879 = vadd.f32 %v671, %v878
    %v880 = vpop.f32.mrb[0].mxu0
    %v881 = vadd.f32 %v667, %v880
    %v882 = vpop.f32.mrb[0].mxu0
    %v883 = vadd.f32 %v671, %v882
    %884 = vmatprep.mubr.bf16.mxu0 0
    %885 = vmatmul.mubr.bf16.gmra.mrb[0].mxu0 %v742
    %v886 = vpop.f32.mrb[0].mxu0
    %v887 = vadd.f32 %v667, %v886
    %v888 = vpop.f32.mrb[0].mxu0
    %v889 = vadd.f32 %v671, %v888
    %v890 = vpop.f32.mrb[0].mxu0
    %v891 = vadd.f32 %v667, %v890
    %v892 = vpop.f32.mrb[0].mxu0
    %v893 = vadd.f32 %v671, %v892
    %894 = vmatprep.mubr.bf16.mxu0 0
    %895 = vmatmul.mubr.bf16.gmra.mrb[0].mxu0 %v745
    %v896 = vpop.f32.mrb[0].mxu0
    %v897 = vadd.f32 %v667, %v896
    %v898 = vpop.f32.mrb[0].mxu0
    %v899 = vadd.f32 %v671, %v898
    %v900 = vpop.f32.mrb[0].mxu0
    %v901 = vadd.f32 %v667, %v900
    %v902 = vpop.f32.mrb[0].mxu0
    %v903 = vadd.f32 %v671, %v902
    %904 = vmatprep.mubr.bf16.mxu0 0
    %905 = vmatmul.mubr.bf16.gmra.mrb[0].mxu0 %v748
    %v906 = vpop.f32.mrb[0].mxu0
    %v907 = vadd.f32 %v667, %v906
    %v908 = vpop.f32.mrb[0].mxu0
    %v909 = vadd.f32 %v671, %v908
    %v910 = vpop.f32.mrb[0].mxu0
    %v911 = vadd.f32 %v667, %v910
    %v912 = vpop.f32.mrb[0].mxu0
    %v913 = vadd.f32 %v671, %v912
    %914 = vmatprep.mubr.bf16.mxu0 0
    %915 = vmatmul.mubr.bf16.gmra.mrb[0].mxu0 %v751
    %v916 = vpop.f32.mrb[0].mxu0
    %v917 = vadd.f32 %v667, %v916
    %v918 = vpop.f32.mrb[0].mxu0
    %v919 = vadd.f32 %v671, %v918
    %v920 = vpop.f32.mrb[0].mxu0
    %v921 = vadd.f32 %v667, %v920
    %v922 = vpop.f32.mrb[0].mxu0
    %v923 = vadd.f32 %v671, %v922
    %924 = vmatprep.mubr.bf16.mxu0 0
    %925 = vmatmul.mubr.bf16.gmra.mrb[0].mxu0 %v754
    %v926 = vpop.f32.mrb[0].mxu0
    %v927 = vadd.f32 %v667, %v926
    %v928 = vpop.f32.mrb[0].mxu0
    %v929 = vadd.f32 %v671, %v928
    %v930 = vpop.f32.mrb[0].mxu0
    %v931 = vadd.f32 %v667, %v930
    %v932 = vpop.f32.mrb[0].mxu0
    %v933 = vadd.f32 %v671, %v932
    %934 = vmatprep.mubr.bf16.mxu0 0
    %935 = vmatmul.mubr.bf16.gmra.mrb[0].mxu0 %v757
    %v936 = vpop.f32.mrb[0].mxu0
    %v937 = vadd.f32 %v667, %v936
    %v938 = vpop.f32.mrb[0].mxu0
    %v939 = vadd.f32 %v671, %v938
    %v940 = vpop.f32.mrb[0].mxu0
    %v941 = vadd.f32 %v667, %v940
    %v942 = vpop.f32.mrb[0].mxu0
    %v943 = vadd.f32 %v671, %v942
    %944 = vmatprep.mubr.bf16.mxu0 0
    %945 = vmatmul.mubr.bf16.gmra.mrb[0].mxu0 %v760
    %v946 = vpop.f32.mrb[0].mxu0
    %v947 = vadd.f32 %v667, %v946
    %v948 = vpop.f32.mrb[0].mxu0
    %v949 = vadd.f32 %v671, %v948
    %v950 = vpop.f32.mrb[0].mxu0
    %v951 = vadd.f32 %v667, %v950
    %v952 = vpop.f32.mrb[0].mxu0
    %v953 = vadd.f32 %v671, %v952
    %954 = vdwg.mxu0
    %955 = vst [vmem:[#allocation2] sm:$0xff] %v797
    %956 = vst [vmem:[#allocation2 + $0x10] sm:$0xff] %v801
    %957 = vst [vmem:[#allocation2 + $0x20] sm:$0xff] %v807
    %958 = vst [vmem:[#allocation2 + $0x30] sm:$0xff] %v811
    %959 = vst [vmem:[#allocation2 + $0x40] sm:$0xff] %v817
    %960 = vst [vmem:[#allocation2 + $0x50] sm:$0xff] %v821
    %961 = vst [vmem:[#allocation2 + $0x60] sm:$0xff] %v827
    %962 = vst [vmem:[#allocation2 + $0x70] sm:$0xff] %v831
    %963 = vst [vmem:[#allocation2 + $0x80] sm:$0xff] %v837
    %964 = vst [vmem:[#allocation2 + $0x90] sm:$0xff] %v841
    %965 = vst [vmem:[#allocation2 + $0xa0] sm:$0xff] %v847
    %966 = vst [vmem:[#allocation2 + $0xb0] sm:$0xff] %v851
    %967 = vst [vmem:[#allocation2 + $0xc0] sm:$0xff] %v857
    %968 = vst [vmem:[#allocation2 + $0xd0] sm:$0xff] %v861
    %969 = vst [vmem:[#allocation2 + $0xe0] sm:$0xff] %v867
    %970 = vst [vmem:[#allocation2 + $0xf0] sm:$0xff] %v871
    %971 = vst [vmem:[#allocation2 + $0x100] sm:$0xff] %v877
    %972 = vst [vmem:[#allocation2 + $0x110] sm:$0xff] %v881
    %973 = vst [vmem:[#allocation2 + $0x120] sm:$0xff] %v887
    %974 = vst [vmem:[#allocation2 + $0x130] sm:$0xff] %v891
    %975 = vst [vmem:[#allocation2 + $0x140] sm:$0xff] %v897
    %976 = vst [vmem:[#allocation2 + $0x150] sm:$0xff] %v901
    %977 = vst [vmem:[#allocation2 + $0x160] sm:$0xff] %v907
    %978 = vst [vmem:[#allocation2 + $0x170] sm:$0xff] %v911
    %979 = vst [vmem:[#allocation2 + $0x180] sm:$0xff] %v917
    %980 = vst [vmem:[#allocation2 + $0x190] sm:$0xff] %v921
    %981 = vst [vmem:[#allocation2 + $0x1a0] sm:$0xff] %v927
    %982 = vst [vmem:[#allocation2 + $0x1b0] sm:$0xff] %v931
    %983 = vst [vmem:[#allocation2 + $0x1c0] sm:$0xff] %v937
    %984 = vst [vmem:[#allocation2 + $0x1d0] sm:$0xff] %v941
    %985 = vst [vmem:[#allocation2 + $0x1e0] sm:$0xff] %v947
    %986 = vst [vmem:[#allocation2 + $0x1f0] sm:$0xff] %v951
    %v987 = vlaneseq
    %v988 = vand.u32 %v987, 127
    %vm989 = vcmp.lt.s32.totalorder %v988, 11
    %v990 = vxor.u32 %v799, 2147483648
    %v991 = vxor.u32 %v803, 2147483648
    %v992 = vxor.u32 %v809, 2147483648
    %v993 = vxor.u32 %v813, 2147483648
    %v994 = vxor.u32 %v819, 2147483648
    %v995 = vxor.u32 %v823, 2147483648
    %v996 = vxor.u32 %v829, 2147483648
    %v997 = vxor.u32 %v833, 2147483648
    %v998 = vxor.u32 %v839, 2147483648
    %v999 = vxor.u32 %v843, 2147483648
    %v1000 = vxor.u32 %v849, 2147483648
    %v1001 = vxor.u32 %v853, 2147483648
    %v1002 = vxor.u32 %v859, 2147483648
    %v1003 = vxor.u32 %v863, 2147483648
    %v1004 = vxor.u32 %v869, 2147483648
    %v1005 = vxor.u32 %v873, 2147483648
    %v1006 = vxor.u32 %v879, 2147483648
    %v1007 = vxor.u32 %v883, 2147483648
    %v1008 = vxor.u32 %v889, 2147483648
    %v1009 = vxor.u32 %v893, 2147483648
    %v1010 = vxor.u32 %v899, 2147483648
    %v1011 = vxor.u32 %v903, 2147483648
    %v1012 = vxor.u32 %v909, 2147483648
    %v1013 = vxor.u32 %v913, 2147483648
    %v1014 = vxor.u32 %v919, 2147483648
    %v1015 = vxor.u32 %v923, 2147483648
    %v1016 = vxor.u32 %v929, 2147483648
    %v1017 = vxor.u32 %v933, 2147483648
    %v1018 = vxor.u32 %v939, 2147483648
    %v1019 = vxor.u32 %v943, 2147483648
    %v1020 = vxor.u32 %v949, 2147483648
    %v1021 = vxor.u32 %v953, 2147483648
    %v1022 = vmul.f32 %v990, 1.442695
    %v1023 = vpow.pop %v1022
    %v1024 = vmul.f32 %v991, 1.442695
    %v1025 = vpow.pop %v1024
    %v1026 = vmul.f32 %v992, 1.442695
    %v1027 = vpow.pop %v1026
    %v1028 = vmul.f32 %v993, 1.442695
    %v1029 = vpow.pop %v1028
    %v1030 = vmul.f32 %v994, 1.442695
    %v1031 = vpow.pop %v1030
    %v1032 = vmul.f32 %v995, 1.442695
    %v1033 = vpow.pop %v1032
    %v1034 = vmul.f32 %v996, 1.442695
    %v1035 = vpow.pop %v1034
    %v1036 = vmul.f32 %v997, 1.442695
    %v1037 = vpow.pop %v1036
    %v1038 = vmul.f32 %v998, 1.442695
    %v1039 = vpow.pop %v1038
    %v1040 = vmul.f32 %v999, 1.442695
    %v1041 = vpow.pop %v1040
    %v1042 = vmul.f32 %v1000, 1.442695
    %v1043 = vpow.pop %v1042
    %v1044 = vmul.f32 %v1001, 1.442695
    %v1045 = vpow.pop %v1044
    %v1046 = vmul.f32 %v1002, 1.442695
    %v1047 = vpow.pop %v1046
    %v1048 = vmul.f32 %v1003, 1.442695
    %v1049 = vpow.pop %v1048
    %v1050 = vmul.f32 %v1004, 1.442695
    %v1051 = vpow.pop %v1050
    %v1052 = vmul.f32 %v1005, 1.442695
    %v1053 = vpow.pop %v1052
    %v1054 = vmul.f32 %v1006, 1.442695
    %v1055 = vpow.pop %v1054
    %v1056 = vmul.f32 %v1007, 1.442695
    %v1057 = vpow.pop %v1056
    %v1058 = vmul.f32 %v1008, 1.442695
    %v1059 = vpow.pop %v1058
    %v1060 = vmul.f32 %v1009, 1.442695
    %v1061 = vpow.pop %v1060
    %v1062 = vmul.f32 %v1010, 1.442695
    %v1063 = vpow.pop %v1062
    %v1064 = vmul.f32 %v1011, 1.442695
    %v1065 = vpow.pop %v1064
    %v1066 = vmul.f32 %v1012, 1.442695
    %v1067 = vpow.pop %v1066
    %v1068 = vmul.f32 %v1013, 1.442695
    %v1069 = vpow.pop %v1068
    %v1070 = vmul.f32 %v1014, 1.442695
    %v1071 = vpow.pop %v1070
    %v1072 = vmul.f32 %v1015, 1.442695
    %v1073 = vpow.pop %v1072
    %v1074 = vmul.f32 %v1016, 1.442695
    %v1075 = vpow.pop %v1074
    %v1076 = vmul.f32 %v1017, 1.442695
    %v1077 = vpow.pop %v1076
    %v1078 = vmul.f32 %v1018, 1.442695
    %v1079 = vpow.pop %v1078
    %v1080 = vmul.f32 %v1019, 1.442695
    %v1081 = vpow.pop %v1080
    %v1082 = vmul.f32 %v1020, 1.442695
    %v1083 = vpow.pop %v1082
    %v1084 = vmul.f32 %v1021, 1.442695
    %v1085 = vpow.pop %v1084
    %v1086 = vadd.f32 %v1023, 1.0
    %v1087 = vadd.f32 %v1025, 1.0
    %v1088 = vadd.f32 %v1027, 1.0
    %v1089 = vadd.f32 %v1029, 1.0
    %v1090 = vadd.f32 %v1031, 1.0
    %v1091 = vadd.f32 %v1033, 1.0
    %v1092 = vadd.f32 %v1035, 1.0
    %v1093 = vadd.f32 %v1037, 1.0
    %v1094 = vadd.f32 %v1039, 1.0
    %v1095 = vadd.f32 %v1041, 1.0
    %v1096 = vadd.f32 %v1043, 1.0
    %v1097 = vadd.f32 %v1045, 1.0
    %v1098 = vadd.f32 %v1047, 1.0
    %v1099 = vadd.f32 %v1049, 1.0
    %v1100 = vadd.f32 %v1051, 1.0
    %v1101 = vadd.f32 %v1053, 1.0
    %v1102 = vadd.f32 %v1055, 1.0
    %v1103 = vadd.f32 %v1057, 1.0
    %v1104 = vadd.f32 %v1059, 1.0
    %v1105 = vadd.f32 %v1061, 1.0
    %v1106 = vadd.f32 %v1063, 1.0
    %v1107 = vadd.f32 %v1065, 1.0
    %v1108 = vadd.f32 %v1067, 1.0
    %v1109 = vadd.f32 %v1069, 1.0
    %v1110 = vadd.f32 %v1071, 1.0
    %v1111 = vadd.f32 %v1073, 1.0
    %v1112 = vadd.f32 %v1075, 1.0
    %v1113 = vadd.f32 %v1077, 1.0
    %v1114 = vadd.f32 %v1079, 1.0
    %v1115 = vadd.f32 %v1081, 1.0
    %v1116 = vadd.f32 %v1083, 1.0
    %v1117 = vadd.f32 %v1085, 1.0
    %v1118 = vrcp.pop %v1086
    %v1119 = vmul.f32 1.0, %v1118
    %v1120 = vrcp.pop %v1087
    %v1121 = vmul.f32 1.0, %v1120
    %v1122 = vrcp.pop %v1088
    %v1123 = vmul.f32 1.0, %v1122
    %v1124 = vrcp.pop %v1089
    %v1125 = vmul.f32 1.0, %v1124
    %v1126 = vrcp.pop %v1090
    %v1127 = vmul.f32 1.0, %v1126
    %v1128 = vrcp.pop %v1091
    %v1129 = vmul.f32 1.0, %v1128
    %v1130 = vrcp.pop %v1092
    %v1131 = vmul.f32 1.0, %v1130
    %v1132 = vrcp.pop %v1093
    %v1133 = vmul.f32 1.0, %v1132
    %v1134 = vrcp.pop %v1094
    %v1135 = vmul.f32 1.0, %v1134
    %v1136 = vrcp.pop %v1095
    %v1137 = vmul.f32 1.0, %v1136
    %v1138 = vrcp.pop %v1096
    %v1139 = vmul.f32 1.0, %v1138
    %v1140 = vrcp.pop %v1097
    %v1141 = vmul.f32 1.0, %v1140
    %v1142 = vrcp.pop %v1098
    %v1143 = vmul.f32 1.0, %v1142
    %v1144 = vrcp.pop %v1099
    %v1145 = vmul.f32 1.0, %v1144
    %v1146 = vrcp.pop %v1100
    %v1147 = vmul.f32 1.0, %v1146
    %v1148 = vrcp.pop %v1101
    %v1149 = vmul.f32 1.0, %v1148
    %v1150 = vrcp.pop %v1102
    %v1151 = vmul.f32 1.0, %v1150
    %v1152 = vrcp.pop %v1103
    %v1153 = vmul.f32 1.0, %v1152
    %v1154 = vrcp.pop %v1104
    %v1155 = vmul.f32 1.0, %v1154
    %v1156 = vrcp.pop %v1105
    %v1157 = vmul.f32 1.0, %v1156
    %v1158 = vrcp.pop %v1106
    %v1159 = vmul.f32 1.0, %v1158
    %v1160 = vrcp.pop %v1107
    %v1161 = vmul.f32 1.0, %v1160
    %v1162 = vrcp.pop %v1108
    %v1163 = vmul.f32 1.0, %v1162
    %v1164 = vrcp.pop %v1109
    %v1165 = vmul.f32 1.0, %v1164
    %v1166 = vrcp.pop %v1110
    %v1167 = vmul.f32 1.0, %v1166
    %v1168 = vrcp.pop %v1111
    %v1169 = vmul.f32 1.0, %v1168
    %v1170 = vrcp.pop %v1112
    %v1171 = vmul.f32 1.0, %v1170
    %v1172 = vrcp.pop %v1113
    %v1173 = vmul.f32 1.0, %v1172
    %v1174 = vrcp.pop %v1114
    %v1175 = vmul.f32 1.0, %v1174
    %v1176 = vrcp.pop %v1115
    %v1177 = vmul.f32 1.0, %v1176
    %v1178 = vrcp.pop %v1116
    %v1179 = vmul.f32 1.0, %v1178
    %v1180 = vrcp.pop %v1117
    %v1181 = vmul.f32 1.0, %v1180
    %v1182 = vsel %vm989, %v1119, %v799
    %v1183 = vsel %vm989, %v1121, %v803
    %v1184 = vsel %vm989, %v1123, %v809
    %v1185 = vsel %vm989, %v1125, %v813
    %v1186 = vsel %vm989, %v1127, %v819
    %v1187 = vsel %vm989, %v1129, %v823
    %v1188 = vsel %vm989, %v1131, %v829
    %v1189 = vsel %vm989, %v1133, %v833
    %v1190 = vsel %vm989, %v1135, %v839
    %v1191 = vsel %vm989, %v1137, %v843
    %v1192 = vsel %vm989, %v1139, %v849
    %v1193 = vsel %vm989, %v1141, %v853
    %v1194 = vsel %vm989, %v1143, %v859
    %v1195 = vsel %vm989, %v1145, %v863
    %v1196 = vsel %vm989, %v1147, %v869
    %v1197 = vsel %vm989, %v1149, %v873
    %v1198 = vsel %vm989, %v1151, %v879
    %v1199 = vsel %vm989, %v1153, %v883
    %v1200 = vsel %vm989, %v1155, %v889
    %v1201 = vsel %vm989, %v1157, %v893
    %v1202 = vsel %vm989, %v1159, %v899
    %v1203 = vsel %vm989, %v1161, %v903
    %v1204 = vsel %vm989, %v1163, %v909
    %v1205 = vsel %vm989, %v1165, %v913
    %v1206 = vsel %vm989, %v1167, %v919
    %v1207 = vsel %vm989, %v1169, %v923
    %v1208 = vsel %vm989, %v1171, %v929
    %v1209 = vsel %vm989, %v1173, %v933
    %v1210 = vsel %vm989, %v1175, %v939
    %v1211 = vsel %vm989, %v1177, %v943
    %v1212 = vsel %vm989, %v1179, %v949
    %v1213 = vsel %vm989, %v1181, %v953
    %1214 = vst [vmem:[#allocation2 + $0x8] sm:$0xff] %v1182
    %1215 = vst [vmem:[#allocation2 + $0x18] sm:$0xff] %v1183
    %1216 = vst [vmem:[#allocation2 + $0x28] sm:$0xff] %v1184
    %1217 = vst [vmem:[#allocation2 + $0x38] sm:$0xff] %v1185
    %1218 = vst [vmem:[#allocation2 + $0x48] sm:$0xff] %v1186
    %1219 = vst [vmem:[#allocation2 + $0x58] sm:$0xff] %v1187
    %1220 = vst [vmem:[#allocation2 + $0x68] sm:$0xff] %v1188
    %1221 = vst [vmem:[#allocation2 + $0x78] sm:$0xff] %v1189
    %1222 = vst [vmem:[#allocation2 + $0x88] sm:$0xff] %v1190
    %1223 = vst [vmem:[#allocation2 + $0x98] sm:$0xff] %v1191
    %1224 = vst [vmem:[#allocation2 + $0xa8] sm:$0xff] %v1192
    %1225 = vst [vmem:[#allocation2 + $0xb8] sm:$0xff] %v1193
    %1226 = vst [vmem:[#allocation2 + $0xc8] sm:$0xff] %v1194
    %1227 = vst [vmem:[#allocation2 + $0xd8] sm:$0xff] %v1195
    %1228 = vst [vmem:[#allocation2 + $0xe8] sm:$0xff] %v1196
    %1229 = vst [vmem:[#allocation2 + $0xf8] sm:$0xff] %v1197
    %1230 = vst [vmem:[#allocation2 + $0x108] sm:$0xff] %v1198
    %1231 = vst [vmem:[#allocation2 + $0x118] sm:$0xff] %v1199
    %1232 = vst [vmem:[#allocation2 + $0x128] sm:$0xff] %v1200
    %1233 = vst [vmem:[#allocation2 + $0x138] sm:$0xff] %v1201
    %1234 = vst [vmem:[#allocation2 + $0x148] sm:$0xff] %v1202
    %1235 = vst [vmem:[#allocation2 + $0x158] sm:$0xff] %v1203
    %1236 = vst [vmem:[#allocation2 + $0x168] sm:$0xff] %v1204
    %1237 = vst [vmem:[#allocation2 + $0x178] sm:$0xff] %v1205
    %1238 = vst [vmem:[#allocation2 + $0x188] sm:$0xff] %v1206
    %1239 = vst [vmem:[#allocation2 + $0x198] sm:$0xff] %v1207
    %1240 = vst [vmem:[#allocation2 + $0x1a8] sm:$0xff] %v1208
    %1241 = vst [vmem:[#allocation2 + $0x1b8] sm:$0xff] %v1209
    %1242 = vst [vmem:[#allocation2 + $0x1c8] sm:$0xff] %v1210
    %1243 = vst [vmem:[#allocation2 + $0x1d8] sm:$0xff] %v1211
    %1244 = vst [vmem:[#allocation2 + $0x1e8] sm:$0xff] %v1212
    %1245 = vst [vmem:[#allocation2 + $0x1f8] sm:$0xff] %v1213
    // Predicated region
    $region30: #{tpu_custom_call.1} parent=1 // pred_check
      _
    $region31: #{tpu_custom_call.1} parent=1 // pred_check_branch
      %1247 = sbr.rel (0) target = $region33
    $region32: #{tpu_custom_call.1} parent=1 // pred_region
      %s1249 = ssub.s32 8192, 8192
      %1250 = vsyncadd [#allocation3], %s1249
      %s1251 = sshll.u32 [#allocation2], 4
      %s1252 = int_to_ptr.vmem [resolvable:$true] %s1251
      %1257 = dma.vmem_to_hbm [thread:$0]  %s1252, 8192, %s7, [#allocation3], 256, 256, 16
    $region33: #{tpu_custom_call.1} parent=1 // pred_fallthru
      _
    // Predicated region
    $region34: #{tpu_custom_call.1} parent=1 // pred_check
      _
    $region35: #{tpu_custom_call.1} parent=1 // pred_check_branch
      %1259 = sbr.rel (0) target = $region37
    $region36: #{tpu_custom_call.1} parent=1 // pred_region
      %1260 = dma.done [#allocation3], 8192
    $region37: #{tpu_custom_call.1} parent=1 // pred_fallthru
      _
    %1261 = vsyncpa [#allocation3], 1

</llo_original>
